<compile_context>
chip_gen: v5e
topology: v5e:2x2
jax: 0.10.0
libtpu: 0.0.40
codegen_flags: <defaults>
</compile_context>

<pallas_src>
import functools

import jax
import jax.numpy as jnp
from jax.experimental import pallas as pl
from jax.experimental.pallas import tpu as pltpu


def _pa_kernel(x_ref, w_ref, b_ref, o_ref, *, mxu_dtype, n_blk):
  """Fused 1x1-conv + bias + sigmoid + multiply on an (n_blk, C, T_HW) block."""
  w_m = w_ref[...].astype(mxu_dtype)                     # (C, C), resident
  b = b_ref[...]                                         # (C, T_HW), f32
  for i in range(n_blk):                                 # small static unroll
    x = x_ref[i]                                         # (C, T_HW), f32
    y = jnp.dot(w_m, x.astype(mxu_dtype),
                preferred_element_type=jnp.float32) + b  # (C, T_HW)
    # sigmoid(y) = 1 / (1 + exp(-y)); divide goes to the (idle) EUP slot.
    attn = pl.reciprocal(1.0 + jnp.exp(-y), approx=True)
    o_ref[i] = (x * attn).astype(o_ref.dtype)            # gate with original x


def _pick_hw_tile(hw, cap):
  """Largest multiple-of-128 tile <= cap that divides hw (else full hw)."""
  if hw <= cap or hw % 128 != 0:
    return hw
  for k in range(cap // 128, 0, -1):
    t = k * 128
    if hw % t == 0:
      return t
  return hw


def pa_forward(x_nchw, conv_w, conv_b, *, use_bf16_mxu=True, t_hw_cap=16384):
  """PA forward. x: (N, C, H, W), conv_w: (C, C, 1, 1), conv_b: (C,)."""
  n, c, h, w = x_nchw.shape
  hw = h * w
  x_tok = x_nchw.reshape(n, c, hw)                       # free reshape
  w_mat = conv_w.reshape(c, c).astype(jnp.float32)       # (c_out, c_in)

  mxu_dtype = jnp.bfloat16 if use_bf16_mxu else jnp.float32

  # Spatial tile: cap lane width so big feature maps don't blow v7x's 32 MiB
  # default scoped VMEM; tiny maps take the whole thing in one block.
  t_hw = _pick_hw_tile(hw, t_hw_cap)
  num_hw_tiles = hw // t_hw

  # Collapse the batch axis into the block when the whole slab is trivially
  # VMEM-resident -> a single grid step on single-TC v5e/v6e for small inputs.
  # Otherwise shard batch across a parallel grid axis (v7x megacore).
  per_img_tile_bytes = c * t_hw * 4 * 2                  # x + out, f32
  nb = n if (n <= 8 and n * per_img_tile_bytes <= (8 << 20)) else 1
  grid = (n // nb, num_hw_tiles)

  # Lane-dense bias operand (C, T_HW): plain vadd in-kernel, loaded once.
  b_full = jnp.broadcast_to(conv_b.astype(jnp.float32).reshape(c, 1), (c, t_hw))

  cost = pl.CostEstimate(
      flops=2 * n * c * c * hw + 5 * n * c * hw,
      transcendentals=n * c * hw,
      bytes_accessed=2 * x_nchw.size * x_nchw.dtype.itemsize
      + w_mat.size * 4 + b_full.size * 4,
  )

  out = pl.pallas_call(
      functools.partial(_pa_kernel, mxu_dtype=mxu_dtype, n_blk=nb),
      out_shape=jax.ShapeDtypeStruct((n, c, hw), x_nchw.dtype),
      grid=grid,
      in_specs=[
          pl.BlockSpec((nb, c, t_hw), lambda bi, si: (bi, 0, si)),  # x block
          pl.BlockSpec((c, c), lambda bi, si: (0, 0)),              # weight
          pl.BlockSpec((c, t_hw), lambda bi, si: (0, 0)),           # bias
      ],
      out_specs=pl.BlockSpec((nb, c, t_hw), lambda bi, si: (bi, 0, si)),
      compiler_params=pltpu.CompilerParams(
          dimension_semantics=("parallel", "parallel")),
      cost_estimate=cost,
  )(x_tok, w_mat, b_full)
  return out.reshape(n, c, h, w)


if __name__ == "__main__":
  N, NF, H, W = 2, 32, 16, 16                            # nf=32 (dims[0])
  key = jax.random.PRNGKey(0)
  kx, kw, kb = jax.random.split(key, 3)

  x = jax.random.normal(kx, (N, NF, H, W), dtype=jnp.float32)
  # PyTorch Conv2d default init: U(-1/sqrt(fan_in), 1/sqrt(fan_in)), fan_in=NF.
  bound = 1.0 / (NF ** 0.5)
  conv_w = jax.random.uniform(kw, (NF, NF, 1, 1), minval=-bound, maxval=bound,
                              dtype=jnp.float32)
  conv_b = jax.random.uniform(kb, (NF,), minval=-bound, maxval=bound,
                              dtype=jnp.float32)

  pa = jax.jit(pa_forward)
  y = jax.block_until_ready(pa(x, conv_w, conv_b))
  assert y.shape == x.shape and y.dtype == x.dtype

  # Pure-JAX reference (tolerance covers bf16-MXU + approx-reciprocal error).
  ref = x * jax.nn.sigmoid(
      jnp.einsum("oi,nihw->nohw", conv_w[:, :, 0, 0], x,
                 precision=jax.lax.Precision.HIGHEST)
      + conv_b[None, :, None, None])
  assert bool(jnp.allclose(y, ref, atol=2e-2, rtol=2e-2))

  print("KERNEL_OK")
</pallas_src>

<mosaic_0001>
module attributes {stable_mosaic.version = 11 : i64} {
  func.func @_pa_kernel(%arg0: i32, %arg1: i32, %arg2: memref<2x32x256xf32, #tpu.memory_space<vmem>>, %arg3: memref<32x32xf32, #tpu.memory_space<vmem>>, %arg4: memref<32x256xf32, #tpu.memory_space<vmem>>, %arg5: memref<2x32x256xf32, #tpu.memory_space<vmem>>) attributes {dimension_semantics = [#tpu.dimension_semantics<parallel>, #tpu.dimension_semantics<parallel>], iteration_bounds = array<i64: 1, 1>, scalar_prefetch = 0 : i64, scratch_operands = 0 : i64, tpu.core_type = #tpu.core_type<tc>, window_params = [{transform_indices = @transform_0, window_bounds = array<i64: 2, 32, 256>}, {pipeline_mode = #tpu.pipeline_mode<synchronous>, transform_indices = @transform_1, window_bounds = array<i64: 32, 32>}, {pipeline_mode = #tpu.pipeline_mode<synchronous>, transform_indices = @transform_2, window_bounds = array<i64: 32, 256>}, {transform_indices = @transform_3, window_bounds = array<i64: 2, 32, 256>}]} {
    %c0 = arith.constant 0 : index
    %c0_0 = arith.constant 0 : index
    %0 = vector.load %arg3[%c0, %c0_0] : memref<32x32xf32, #tpu.memory_space<vmem>>, vector<32x32xf32>
    %1 = arith.truncf %0 : vector<32x32xf32> to vector<32x32xbf16>
    %c0_1 = arith.constant 0 : index
    %c0_2 = arith.constant 0 : index
    %2 = vector.load %arg4[%c0_1, %c0_2] : memref<32x256xf32, #tpu.memory_space<vmem>>, vector<32x256xf32>
    %c0_3 = arith.constant 0 : index
    %c0_4 = arith.constant 0 : index
    %c0_5 = arith.constant 0 : index
    %3 = vector.load %arg2[%c0_3, %c0_4, %c0_5] : memref<2x32x256xf32, #tpu.memory_space<vmem>>, vector<1x32x256xf32>
    %4 = vector.shape_cast %3 : vector<1x32x256xf32> to vector<32x256xf32>
    %5 = arith.truncf %4 : vector<32x256xf32> to vector<32x256xbf16>
    %cst = arith.constant dense<0.000000e+00> : vector<32x256xf32>
    %6 = tpu.matmul %1, %5, %cst {dimension_numbers = #tpu.dot_dimension_numbers<[1], [0], [0], [1], [0, 0, 1, 1], [], []>} : vector<32x32xbf16>, vector<32x256xbf16>, vector<32x256xf32> -> vector<32x256xf32>
    %7 = arith.addf %6, %2 : vector<32x256xf32>
    %cst_6 = arith.constant 0.000000e+00 : f32
    %8 = vector.broadcast %cst_6 : f32 to vector<32x256xf32>
    %9 = arith.subf %8, %7 : vector<32x256xf32>
    %10 = math.exp %9 : vector<32x256xf32>
    %cst_7 = arith.constant 1.000000e+00 : f32
    %11 = vector.broadcast %cst_7 : f32 to vector<32x256xf32>
    %12 = arith.addf %11, %10 : vector<32x256xf32>
    %13 = tpu.reciprocal %12 {approx = true} : vector<32x256xf32> -> vector<32x256xf32>
    %14 = arith.mulf %4, %13 : vector<32x256xf32>
    %c0_8 = arith.constant 0 : index
    %c0_9 = arith.constant 0 : index
    %c0_10 = arith.constant 0 : index
    %15 = vector.load %arg5[%c0_8, %c0_9, %c0_10] : memref<2x32x256xf32, #tpu.memory_space<vmem>>, vector<1x32x256xf32>
    %16 = vector.shape_cast %15 : vector<1x32x256xf32> to vector<32x256xf32>
    %17 = vector.shape_cast %14 : vector<32x256xf32> to vector<1x32x256xf32>
    tpu.vector_store %arg5[%c0_8, %c0_9, %c0_10], %17 {strides = array<i32>} : memref<2x32x256xf32, #tpu.memory_space<vmem>>, vector<1x32x256xf32>,
    %c1 = arith.constant 1 : index
    %c0_11 = arith.constant 0 : index
    %c0_12 = arith.constant 0 : index
    %18 = vector.load %arg2[%c1, %c0_11, %c0_12] : memref<2x32x256xf32, #tpu.memory_space<vmem>>, vector<1x32x256xf32>
    %19 = vector.shape_cast %18 : vector<1x32x256xf32> to vector<32x256xf32>
    %20 = arith.truncf %19 : vector<32x256xf32> to vector<32x256xbf16>
    %cst_13 = arith.constant dense<0.000000e+00> : vector<32x256xf32>
    %21 = tpu.matmul %1, %20, %cst_13 {dimension_numbers = #tpu.dot_dimension_numbers<[1], [0], [0], [1], [0, 0, 1, 1], [], []>} : vector<32x32xbf16>, vector<32x256xbf16>, vector<32x256xf32> -> vector<32x256xf32>
    %22 = arith.addf %21, %2 : vector<32x256xf32>
    %cst_14 = arith.constant 0.000000e+00 : f32
    %23 = vector.broadcast %cst_14 : f32 to vector<32x256xf32>
    %24 = arith.subf %23, %22 : vector<32x256xf32>
    %25 = math.exp %24 : vector<32x256xf32>
    %cst_15 = arith.constant 1.000000e+00 : f32
    %26 = vector.broadcast %cst_15 : f32 to vector<32x256xf32>
    %27 = arith.addf %26, %25 : vector<32x256xf32>
    %28 = tpu.reciprocal %27 {approx = true} : vector<32x256xf32> -> vector<32x256xf32>
    %29 = arith.mulf %19, %28 : vector<32x256xf32>
    %c1_16 = arith.constant 1 : index
    %c0_17 = arith.constant 0 : index
    %c0_18 = arith.constant 0 : index
    %30 = vector.load %arg5[%c1_16, %c0_17, %c0_18] : memref<2x32x256xf32, #tpu.memory_space<vmem>>, vector<1x32x256xf32>
    %31 = vector.shape_cast %30 : vector<1x32x256xf32> to vector<32x256xf32>
    %32 = vector.shape_cast %29 : vector<32x256xf32> to vector<1x32x256xf32>
    tpu.vector_store %arg5[%c1_16, %c0_17, %c0_18], %32 {strides = array<i32>} : memref<2x32x256xf32, #tpu.memory_space<vmem>>, vector<1x32x256xf32>,
    return
  }
  func.func @transform_0(%arg0: i32, %arg1: i32) -> (i32, i32, i32) {
    %c0_i32 = arith.constant 0 : i32
    %c0_i32_0 = arith.constant 0 : i32
    return %arg0, %c0_i32, %arg1 : i32, i32, i32
  }
  func.func @transform_1(%arg0: i32, %arg1: i32) -> (i32, i32) {
    %c0_i32 = arith.constant 0 : i32
    %c0_i32_0 = arith.constant 0 : i32
    %c0_i32_1 = arith.constant 0 : i32
    return %c0_i32, %c0_i32_0 : i32, i32
  }
  func.func @transform_2(%arg0: i32, %arg1: i32) -> (i32, i32) {
    %c0_i32 = arith.constant 0 : i32
    %c0_i32_0 = arith.constant 0 : i32
    %c0_i32_1 = arith.constant 0 : i32
    return %c0_i32, %c0_i32_0 : i32, i32
  }
  func.func @transform_3(%arg0: i32, %arg1: i32) -> (i32, i32, i32) {
    %c0_i32 = arith.constant 0 : i32
    %c0_i32_0 = arith.constant 0 : i32
    return %arg0, %c0_i32, %arg1 : i32, i32, i32
  }
}

</mosaic_0001>

<llo_original>
// kernel: pa_forward.1
$region0: #{pa_forward.1}
  #allocation0 [shape = 'u32[]', space=smem, size = 0x4, offset = 0x4, fixed_abs, tag = 'smem constant byte address 0x4 - core index']
  #allocation1 [shape = 'u32[72,128]{1,0:T(1,128)}', space=vmem, size = 0x9000, scoped, tag = 'internal scratch']
  %s0 = inlined_call_operand.vmem [shape: f32[2,32,256], index: 0, kind: input, shape index: {}]
  %s1 = inlined_call_operand.vmem [shape: f32[32,32], index: 1, kind: input, shape index: {}]
  %s2 = inlined_call_operand.vmem [shape: f32[32,256], index: 2, kind: input, shape index: {}]
  %s3 = inlined_call_operand.vmem [shape: f32[2,32,256], index: 3, kind: output, shape index: {}]
  %s4 = sld [smem:[#allocation0]]
  $region22: #{pa_forward.1} parent=0
    _
  %s6 = ssub.s32 1, %s4
  %s7 = scalar_select 0, %s6, %s4
  // Predicated region
  $region2: #{pa_forward.1} parent=0 // pred_check
    _
  $region3: #{pa_forward.1} parent=0 // pred_check_branch
    %9 = sbr.rel (0) target = $region5
  $region4: #{pa_forward.1} parent=0 // pred_region
    _
  $region5: #{pa_forward.1} parent=0 // pred_fallthru
    _
  // Predicated region
  $region6: #{pa_forward.1} parent=0 // pred_check
    _
  $region7: #{pa_forward.1} parent=0 // pred_check_branch
    %11 = sbr.rel (0) target = $region9
  $region8: #{pa_forward.1} parent=0 // pred_region
    _
  $region9: #{pa_forward.1} parent=0 // pred_fallthru
    _
  // Predicated region
  $region10: #{pa_forward.1} parent=0 // pred_check
    _
  $region11: #{pa_forward.1} parent=0 // pred_check_branch
    %13 = sbr.rel (0) target = $region13
  $region12: #{pa_forward.1} parent=0 // pred_region
    _
  $region13: #{pa_forward.1} parent=0 // pred_fallthru
    _
  %v15 = vld [vmem:[%s1] sm:$0xff]
  %v16 = vld [vmem:[%s1 + $0x8] sm:$0xff]
  %v17 = vld [vmem:[%s1 + $0x10] sm:$0xff]
  %v18 = vld [vmem:[%s1 + $0x18] sm:$0xff]
  %v19 = vpack.c.bf16 %v16, %v15
  %v20 = vpack.c.bf16 %v18, %v17
  %v21 = vld [vmem:[%s2] sm:$0xff]
  %v22 = vld [vmem:[%s2 + $0x8] sm:$0xff]
  %v23 = vld [vmem:[%s2 + $0x10] sm:$0xff]
  %v24 = vld [vmem:[%s2 + $0x18] sm:$0xff]
  %v25 = vld [vmem:[%s2 + $0x20] sm:$0xff]
  %v26 = vld [vmem:[%s2 + $0x28] sm:$0xff]
  %v27 = vld [vmem:[%s2 + $0x30] sm:$0xff]
  %v28 = vld [vmem:[%s2 + $0x38] sm:$0xff]
  %v29 = vld [vmem:[%s0] sm:$0xff]
  %v30 = vld [vmem:[%s0 + $0x8] sm:$0xff]
  %v31 = vld [vmem:[%s0 + $0x10] sm:$0xff]
  %v32 = vld [vmem:[%s0 + $0x18] sm:$0xff]
  %v33 = vld [vmem:[%s0 + $0x20] sm:$0xff]
  %v34 = vld [vmem:[%s0 + $0x28] sm:$0xff]
  %v35 = vld [vmem:[%s0 + $0x30] sm:$0xff]
  %v36 = vld [vmem:[%s0 + $0x38] sm:$0xff]
  %v37 = vpack.c.bf16 %v31, %v29
  %v38 = vpack.c.bf16 %v32, %v30
  %v39 = vpack.c.bf16 %v35, %v33
  %v40 = vpack.c.bf16 %v36, %v34
  %vm41 = vcmask 261120
  %v43 = vsel %vm41, %v19, 0
  %v46 = vsel %vm41, %v20, 0
  %48 = vmatpush.bf16.msra.mxu0 0
  %49 = vmatpush.bf16.msra.mxu0 0
  %50 = vmatpush.bf16.msra.mxu0 0
  %51 = vmatpush.bf16.msra.mxu0 0
  %52 = vmatpush.bf16.msra.mxu0 0
  %53 = vmatpush.bf16.msra.mxu0 0
  %54 = vmatpush.bf16.msra.mxu0 %v39
  %55 = vmatpush.bf16.msra.mxu0 %v37
  %56 = vmatmul.bf16.gmra.mxu0 %v43
  %v57 = vpop.f32.mrf.mxu0
  %v58 = vadd.f32 %v21, %v57
  %v59 = vpop.f32.mrf.mxu0
  %v60 = vadd.f32 %v23, %v59
  %61 = vmatmul.bf16.gmra.mxu0 %v46
  %v62 = vpop.f32.mrf.mxu0
  %v63 = vadd.f32 %v25, %v62
  %v64 = vpop.f32.mrf.mxu0
  %v65 = vadd.f32 %v27, %v64
  %66 = vdwg.mxu0
  %67 = vmatpush.bf16.msra.mxu0 0
  %68 = vmatpush.bf16.msra.mxu0 0
  %69 = vmatpush.bf16.msra.mxu0 0
  %70 = vmatpush.bf16.msra.mxu0 0
  %71 = vmatpush.bf16.msra.mxu0 0
  %72 = vmatpush.bf16.msra.mxu0 0
  %73 = vmatpush.bf16.msra.mxu0 %v40
  %74 = vmatpush.bf16.msra.mxu0 %v38
  %75 = vmatmul.bf16.gmra.mxu0 %v43
  %v76 = vpop.f32.mrf.mxu0
  %v77 = vadd.f32 %v22, %v76
  %v78 = vpop.f32.mrf.mxu0
  %v79 = vadd.f32 %v24, %v78
  %80 = vmatmul.bf16.gmra.mxu0 %v46
  %v81 = vpop.f32.mrf.mxu0
  %v82 = vadd.f32 %v26, %v81
  %v83 = vpop.f32.mrf.mxu0
  %v84 = vadd.f32 %v28, %v83
  %85 = vdwg.mxu0
  %v86 = vsub.f32 0.0, %v58
  %v87 = vsub.f32 0.0, %v77
  %v88 = vsub.f32 0.0, %v60
  %v89 = vsub.f32 0.0, %v79
  %v90 = vsub.f32 0.0, %v63
  %v91 = vsub.f32 0.0, %v82
  %v92 = vsub.f32 0.0, %v65
  %v93 = vsub.f32 0.0, %v84
  %v94 = vmul.f32 %v86, 1.442695
  %v95 = vpow.pop %v94
  %v96 = vmul.f32 %v87, 1.442695
  %v97 = vpow.pop %v96
  %v98 = vmul.f32 %v88, 1.442695
  %v99 = vpow.pop %v98
  %v100 = vmul.f32 %v89, 1.442695
  %v101 = vpow.pop %v100
  %v102 = vmul.f32 %v90, 1.442695
  %v103 = vpow.pop %v102
  %v104 = vmul.f32 %v91, 1.442695
  %v105 = vpow.pop %v104
  %v106 = vmul.f32 %v92, 1.442695
  %v107 = vpow.pop %v106
  %v108 = vmul.f32 %v93, 1.442695
  %v109 = vpow.pop %v108
  %v110 = vadd.f32 %v95, 1.0
  %v111 = vadd.f32 %v97, 1.0
  %v112 = vadd.f32 %v99, 1.0
  %v113 = vadd.f32 %v101, 1.0
  %v114 = vadd.f32 %v103, 1.0
  %v115 = vadd.f32 %v105, 1.0
  %v116 = vadd.f32 %v107, 1.0
  %v117 = vadd.f32 %v109, 1.0
  %v118 = vrcp.pop %v110
  %v119 = vrcp.pop %v111
  %v120 = vrcp.pop %v112
  %v121 = vrcp.pop %v113
  %v122 = vrcp.pop %v114
  %v123 = vrcp.pop %v115
  %v124 = vrcp.pop %v116
  %v125 = vrcp.pop %v117
  %v126 = vmul.f32 %v29, %v118
  %v127 = vmul.f32 %v30, %v119
  %v128 = vmul.f32 %v31, %v120
  %v129 = vmul.f32 %v32, %v121
  %v130 = vmul.f32 %v33, %v122
  %v131 = vmul.f32 %v34, %v123
  %v132 = vmul.f32 %v35, %v124
  %v133 = vmul.f32 %v36, %v125
  %134 = vst [vmem:[%s3] sm:$0xff] %v126
  %135 = vst [vmem:[%s3 + $0x8] sm:$0xff] %v127
  %136 = vst [vmem:[%s3 + $0x10] sm:$0xff] %v128
  %137 = vst [vmem:[%s3 + $0x18] sm:$0xff] %v129
  %138 = vst [vmem:[%s3 + $0x20] sm:$0xff] %v130
  %139 = vst [vmem:[%s3 + $0x28] sm:$0xff] %v131
  %140 = vst [vmem:[%s3 + $0x30] sm:$0xff] %v132
  %141 = vst [vmem:[%s3 + $0x38] sm:$0xff] %v133
  %s142 = scalar_lea.vmem %s0, 64
  %v143 = vld [vmem:[%s142] sm:$0xff]
  %v144 = vld [vmem:[%s142 + $0x8] sm:$0xff]
  %v145 = vld [vmem:[%s142 + $0x10] sm:$0xff]
  %v146 = vld [vmem:[%s142 + $0x18] sm:$0xff]
  %v147 = vld [vmem:[%s142 + $0x20] sm:$0xff]
  %v148 = vld [vmem:[%s142 + $0x28] sm:$0xff]
  %v149 = vld [vmem:[%s142 + $0x30] sm:$0xff]
  %v150 = vld [vmem:[%s142 + $0x38] sm:$0xff]
  %v151 = vpack.c.bf16 %v145, %v143
  %v152 = vpack.c.bf16 %v146, %v144
  %v153 = vpack.c.bf16 %v149, %v147
  %v154 = vpack.c.bf16 %v150, %v148
  %155 = vmatpush.bf16.msra.mxu0 0
  %156 = vmatpush.bf16.msra.mxu0 0
  %157 = vmatpush.bf16.msra.mxu0 0
  %158 = vmatpush.bf16.msra.mxu0 0
  %159 = vmatpush.bf16.msra.mxu0 0
  %160 = vmatpush.bf16.msra.mxu0 0
  %161 = vmatpush.bf16.msra.mxu0 %v153
  %162 = vmatpush.bf16.msra.mxu0 %v151
  %163 = vmatmul.bf16.gmra.mxu0 %v43
  %v164 = vpop.f32.mrf.mxu0
  %v165 = vadd.f32 %v21, %v164
  %v166 = vpop.f32.mrf.mxu0
  %v167 = vadd.f32 %v23, %v166
  %168 = vmatmul.bf16.gmra.mxu0 %v46
  %v169 = vpop.f32.mrf.mxu0
  %v170 = vadd.f32 %v25, %v169
  %v171 = vpop.f32.mrf.mxu0
  %v172 = vadd.f32 %v27, %v171
  %173 = vdwg.mxu0
  %174 = vmatpush.bf16.msra.mxu0 0
  %175 = vmatpush.bf16.msra.mxu0 0
  %176 = vmatpush.bf16.msra.mxu0 0
  %177 = vmatpush.bf16.msra.mxu0 0
  %178 = vmatpush.bf16.msra.mxu0 0
  %179 = vmatpush.bf16.msra.mxu0 0
  %180 = vmatpush.bf16.msra.mxu0 %v154
  %181 = vmatpush.bf16.msra.mxu0 %v152
  %182 = vmatmul.bf16.gmra.mxu0 %v43
  %v183 = vpop.f32.mrf.mxu0
  %v184 = vadd.f32 %v22, %v183
  %v185 = vpop.f32.mrf.mxu0
  %v186 = vadd.f32 %v24, %v185
  %187 = vmatmul.bf16.gmra.mxu0 %v46
  %v188 = vpop.f32.mrf.mxu0
  %v189 = vadd.f32 %v26, %v188
  %v190 = vpop.f32.mrf.mxu0
  %v191 = vadd.f32 %v28, %v190
  %192 = vdwg.mxu0
  %v193 = vsub.f32 0.0, %v165
  %v194 = vsub.f32 0.0, %v184
  %v195 = vsub.f32 0.0, %v167
  %v196 = vsub.f32 0.0, %v186
  %v197 = vsub.f32 0.0, %v170
  %v198 = vsub.f32 0.0, %v189
  %v199 = vsub.f32 0.0, %v172
  %v200 = vsub.f32 0.0, %v191
  %v201 = vmul.f32 %v193, 1.442695
  %v202 = vpow.pop %v201
  %v203 = vmul.f32 %v194, 1.442695
  %v204 = vpow.pop %v203
  %v205 = vmul.f32 %v195, 1.442695
  %v206 = vpow.pop %v205
  %v207 = vmul.f32 %v196, 1.442695
  %v208 = vpow.pop %v207
  %v209 = vmul.f32 %v197, 1.442695
  %v210 = vpow.pop %v209
  %v211 = vmul.f32 %v198, 1.442695
  %v212 = vpow.pop %v211
  %v213 = vmul.f32 %v199, 1.442695
  %v214 = vpow.pop %v213
  %v215 = vmul.f32 %v200, 1.442695
  %v216 = vpow.pop %v215
  %v217 = vadd.f32 %v202, 1.0
  %v218 = vadd.f32 %v204, 1.0
  %v219 = vadd.f32 %v206, 1.0
  %v220 = vadd.f32 %v208, 1.0
  %v221 = vadd.f32 %v210, 1.0
  %v222 = vadd.f32 %v212, 1.0
  %v223 = vadd.f32 %v214, 1.0
  %v224 = vadd.f32 %v216, 1.0
  %v225 = vrcp.pop %v217
  %v226 = vrcp.pop %v218
  %v227 = vrcp.pop %v219
  %v228 = vrcp.pop %v220
  %v229 = vrcp.pop %v221
  %v230 = vrcp.pop %v222
  %v231 = vrcp.pop %v223
  %v232 = vrcp.pop %v224
  %v233 = vmul.f32 %v143, %v225
  %v234 = vmul.f32 %v144, %v226
  %v235 = vmul.f32 %v145, %v227
  %v236 = vmul.f32 %v146, %v228
  %v237 = vmul.f32 %v147, %v229
  %v238 = vmul.f32 %v148, %v230
  %v239 = vmul.f32 %v149, %v231
  %v240 = vmul.f32 %v150, %v232
  %s241 = scalar_lea.vmem %s3, 64
  %242 = vst [vmem:[%s241] sm:$0xff] %v233
  %243 = vst [vmem:[%s241 + $0x8] sm:$0xff] %v234
  %244 = vst [vmem:[%s241 + $0x10] sm:$0xff] %v235
  %245 = vst [vmem:[%s241 + $0x18] sm:$0xff] %v236
  %246 = vst [vmem:[%s241 + $0x20] sm:$0xff] %v237
  %247 = vst [vmem:[%s241 + $0x28] sm:$0xff] %v238
  %248 = vst [vmem:[%s241 + $0x30] sm:$0xff] %v239
  %249 = vst [vmem:[%s241 + $0x38] sm:$0xff] %v240
  // Predicated region
  $region14: #{pa_forward.1} parent=0 // pred_check
    _
  $region15: #{pa_forward.1} parent=0 // pred_check_branch
    %251 = sbr.rel (0) target = $region17
  $region16: #{pa_forward.1} parent=0 // pred_region
    _
  $region17: #{pa_forward.1} parent=0 // pred_fallthru
    _
  // Predicated region
  $region18: #{pa_forward.1} parent=0 // pred_check
    _
  $region19: #{pa_forward.1} parent=0 // pred_check_branch
    %253 = sbr.rel (0) target = $region21
  $region20: #{pa_forward.1} parent=0 // pred_region
    _
  $region21: #{pa_forward.1} parent=0 // pred_fallthru
    _

</llo_original>
